<compile_context>
chip_gen: v7x
topology: tpu7x:2x2x1
jax: 0.10.0
libtpu: 0.0.40
codegen_flags: <defaults>
</compile_context>

<pallas_src>
import functools

import jax
import jax.numpy as jnp
from jax.experimental import pallas as pl
from jax.experimental.pallas import tpu as pltpu


def _round_up(x, m):
    return ((x + m - 1) // m) * m


def _cdiv(a, b):
    return -(-a // b)


def _default_compute_dtype():
    """bf16 elementwise on bf16-native VALUs (v6e/v7x), f32 otherwise (v5e/v5p/v4)."""
    try:
        kind = jax.devices()[0].device_kind.lower()
    except Exception:  # pragma: no cover
        return jnp.float32
    if any(tag in kind for tag in ("v6", "v7", "7x")):
        return jnp.bfloat16
    return jnp.float32


def lrml_kernel(u_ref, i_ref, key_ref, mem_ref, segd_ref, bcd_ref, segm_ref, bcm_ref,
                out_ref, *, compute_dtype):
    """Lane-packed LRML forward.

    u_ref/i_ref : (TBP, P*D)   packed embeddings (P logical rows per packed row)
    key_ref     : (P*D, P*M)   block-diagonal key_layer            (VMEM resident)
    mem_ref     : (P*M, P*D)   block-diagonal memory               (VMEM resident)
    segd_ref    : (P*D, P)     per-segment sum indicator (D lanes) (compute dtype)
    bcd_ref     : (P, P*D)     per-segment broadcast to D lanes    (f32)
    segm_ref    : (P*M, P)     per-segment sum indicator (M lanes) (f32)
    bcm_ref     : (P, P*M)     per-segment broadcast to M lanes    (f32)
    out_ref     : (TBP, P)     packed scores (f32)
    """
    cd = compute_dtype
    f32 = jnp.float32

    u = u_ref[...].astype(cd)                     # (TBP, P*D)
    it = i_ref[...].astype(cd)

    segd = segd_ref[...]                          # (P*D, P)
    bcd = bcd_ref[...]                            # (P, P*D)
    segm = segm_ref[...]                          # (P*M, P)
    bcm = bcm_ref[...]                            # (P, P*M)

    # --- _clip_by_norm(t, 2.0) per packed segment (MXU segment sums) ---------
    u_sq = jnp.dot(u * u, segd, preferred_element_type=f32)     # (TBP, P)
    i_sq = jnp.dot(it * it, segd, preferred_element_type=f32)   # (TBP, P)
    u_fac = jnp.minimum(2.0 * jax.lax.rsqrt(u_sq + 1e-12), 1.0)
    i_fac = jnp.minimum(2.0 * jax.lax.rsqrt(i_sq + 1e-12), 1.0)
    u_fac_l = jnp.dot(u_fac, bcd, preferred_element_type=f32).astype(cd)   # (TBP, P*D)
    i_fac_l = jnp.dot(i_fac, bcd, preferred_element_type=f32).astype(cd)
    uc = u * u_fac_l
    ic = it * i_fac_l

    # --- get_relation: attention over the latent memory ----------------------
    interaction = uc * ic                                                  # (TBP, P*D)
    keys = jnp.dot(interaction, key_ref[...], preferred_element_type=f32)  # (TBP, P*M)
    # Packed-row max >= every segment max; softmax is invariant to a
    # per-segment constant shift, so this stays exact and stable.
    keys = keys - jnp.max(keys, axis=-1, keepdims=True)
    e = jnp.exp(keys)                                                      # f32
    denom = jnp.dot(e, segm, preferred_element_type=f32)                   # (TBP, P)
    inv_l = jnp.dot(pl.reciprocal(denom), bcm, preferred_element_type=f32)  # exact recip
    attn = (e * inv_l).astype(cd)                                          # (TBP, P*M)
    relation = jnp.dot(attn, mem_ref[...], preferred_element_type=f32).astype(cd)

    # --- translated metric score ---------------------------------------------
    diff = (uc + relation) - ic                                            # (TBP, P*D)
    d_sq = jnp.dot(diff * diff, segd, preferred_element_type=f32)          # (TBP, P)
    out_ref[...] = -jnp.sqrt(d_sq + 0.001)


def lrml_forward_pallas(users, items, user_table, item_table, key_layer, memory,
                        *, block_rows=8192, compute_dtype=None):
    """LRML.forward(users, items) with relation=None (score per user/item pair)."""
    if compute_dtype is None:
        compute_dtype = _default_compute_dtype()

    D = user_table.shape[1]
    M = key_layer.shape[1]
    assert 128 % D == 0, "lane-packing requires embedding_dim to divide 128"
    P = 128 // D                                   # logical rows per 128-lane vreg row
    B = int(users.shape[0])

    rows_packed = _cdiv(B, P)
    # Packed-row tile: multiple of 8 sublanes, big enough to amortize grid
    # overhead, but capped so the grid keeps >=2 steps for v7x megacore.
    tbp_req = _round_up(max(block_rows // P, 8), 8)
    tbp_cap = _round_up(_cdiv(rows_packed, 2), 8)
    tbp = max(8, min(tbp_req, tbp_cap))
    num_tiles = _cdiv(rows_packed, tbp)
    rows_pad = num_tiles * tbp
    b_pad = rows_pad * P

    # Pad the (tiny) index vectors instead of the gathered embeddings: no extra
    # HBM pass over (B, D) data.  Pad indices gather real row 0 -> finite math.
    users_p = users if b_pad == B else jnp.pad(users, (0, b_pad - B))
    items_p = items if b_pad == B else jnp.pad(items, (0, b_pad - B))

    # Gather in the streaming dtype (tables are small; gathered output is not).
    u = jnp.take(user_table.astype(compute_dtype), users_p, axis=0)        # (b_pad, D)
    it = jnp.take(item_table.astype(compute_dtype), items_p, axis=0)
    u = u.reshape(rows_pad, P * D)        # contiguous -> metadata-only reshape
    it = it.reshape(rows_pad, P * D)

    # Block-diagonal weights + segment-indicator matrices (VMEM resident, tiny).
    eye = jnp.eye(P, dtype=jnp.float32)
    key_bd = jnp.kron(eye, key_layer.astype(jnp.float32)).astype(compute_dtype)  # (P*D, P*M)
    mem_bd = jnp.kron(eye, memory.astype(jnp.float32)).astype(compute_dtype)     # (P*M, P*D)
    segd = jnp.kron(eye, jnp.ones((D, 1), jnp.float32)).astype(compute_dtype)    # (P*D, P)
    bcd = jnp.kron(eye, jnp.ones((1, D), jnp.float32))                            # (P, P*D)
    segm = jnp.kron(eye, jnp.ones((M, 1), jnp.float32))                           # (P*M, P)
    bcm = jnp.kron(eye, jnp.ones((1, M), jnp.float32))                            # (P, P*M)

    kernel = functools.partial(lrml_kernel, compute_dtype=compute_dtype)
    out = pl.pallas_call(
        kernel,
        out_shape=jax.ShapeDtypeStruct((rows_pad, P), jnp.float32),
        grid_spec=pltpu.PrefetchScalarGridSpec(
            num_scalar_prefetch=0,
            grid=(num_tiles,),
            in_specs=[
                pl.BlockSpec((tbp, P * D), lambda i: (i, 0)),     # user rows (streamed)
                pl.BlockSpec((tbp, P * D), lambda i: (i, 0)),     # item rows (streamed)
                pl.BlockSpec((P * D, P * M), lambda i: (0, 0)),   # key blockdiag (resident)
                pl.BlockSpec((P * M, P * D), lambda i: (0, 0)),   # memory blockdiag (resident)
                pl.BlockSpec((P * D, P), lambda i: (0, 0)),       # segment-sum (D lanes)
                pl.BlockSpec((P, P * D), lambda i: (0, 0)),       # broadcast  (D lanes)
                pl.BlockSpec((P * M, P), lambda i: (0, 0)),       # segment-sum (M lanes)
                pl.BlockSpec((P, P * M), lambda i: (0, 0)),       # broadcast  (M lanes)
            ],
            out_specs=pl.BlockSpec((tbp, P), lambda i: (i, 0)),
        ),
        compiler_params=pltpu.CompilerParams(
            dimension_semantics=("parallel",),    # independent batch tiles -> megacore
        ),
    )(u, it, key_bd, mem_bd, segd, bcd, segm, bcm)

    return out.reshape(b_pad)[:B]


def lrml_forward_ref(users, items, user_table, item_table, key_layer, memory):
    """Pure-JAX f32 reference of the PyTorch forward pass (relation=None path)."""
    ue = jnp.take(user_table, users, axis=0)
    ie = jnp.take(item_table, items, axis=0)

    def clip(t, max_norm):
        norm = jnp.sqrt(jnp.sum(t * t, axis=-1, keepdims=True))
        return t * jnp.minimum(max_norm / (norm + 1e-6), 1.0)

    uc = clip(ue, 2.0)
    ic = clip(ie, 2.0)
    keys = (uc * ic) @ key_layer
    attn = jax.nn.softmax(keys, axis=-1)
    relation = attn @ memory
    diff = uc + relation - ic
    return -jnp.sqrt(jnp.sum(diff * diff, axis=-1) + 0.001)


if __name__ == "__main__":
    # Small synthetic configuration consistent with LRML.__init__
    num_users, num_items = 10, 12
    embedding_dim, memory_size = 32, 8

    key = jax.random.PRNGKey(0)
    k_ue, k_ie, k_key, k_mem, k_u, k_i = jax.random.split(key, 6)

    # deterministic parameter init (normal, std=0.01) — mirrors nn.init.normal_
    user_table = 0.01 * jax.random.normal(k_ue, (num_users, embedding_dim), jnp.float32)
    item_table = 0.01 * jax.random.normal(k_ie, (num_items, embedding_dim), jnp.float32)
    key_layer = 0.01 * jax.random.normal(k_key, (embedding_dim, memory_size), jnp.float32)
    memory = 0.01 * jax.random.normal(k_mem, (memory_size, embedding_dim), jnp.float32)

    # ---- test 1: batch not a multiple of the pack factor / sublane count ----
    batch = 10
    users = jax.random.randint(k_u, (batch,), 0, num_users)
    items = jax.random.randint(k_i, (batch,), 0, num_items)
    scores_ref = lrml_forward_ref(users, items, user_table, item_table, key_layer, memory)

    # default (auto compute dtype: bf16 on v6e/v7x, f32 on v5-class)
    scores_auto = lrml_forward_pallas(users, items, user_table, item_table,
                                      key_layer, memory)
    jax.block_until_ready(scores_auto)
    assert scores_auto.shape == (batch,)
    assert jnp.allclose(scores_auto, scores_ref, atol=1e-2, rtol=5e-2), (
        scores_auto, scores_ref)

    # explicit f32 path (tight tolerance vs the f32 reference)
    scores_f32 = lrml_forward_pallas(users, items, user_table, item_table,
                                     key_layer, memory, compute_dtype=jnp.float32)
    jax.block_until_ready(scores_f32)
    assert jnp.allclose(scores_f32, scores_ref, atol=1e-4, rtol=1e-3), (
        scores_f32, scores_ref)

    # explicit bf16 path (loose tolerance)
    scores_bf16 = lrml_forward_pallas(users, items, user_table, item_table,
                                      key_layer, memory, compute_dtype=jnp.bfloat16)
    jax.block_until_ready(scores_bf16)
    assert jnp.allclose(scores_bf16, scores_ref, atol=1e-2, rtol=5e-2), (
        scores_bf16, scores_ref)

    # ---- test 2: multi-tile grid + active norm-clipping (scaled embeddings) ----
    batch2 = 100
    k_u2, k_i2 = jax.random.split(k_u, 2)
    users2 = jax.random.randint(k_u2, (batch2,), 0, num_users)
    items2 = jax.random.randint(k_i2, (batch2,), 0, num_items)
    big_user = user_table * 500.0       # norms >> 2 -> clip factor actually fires
    big_item = item_table * 500.0
    ref2 = lrml_forward_ref(users2, items2, big_user, big_item, key_layer, memory)
    out2 = lrml_forward_pallas(users2, items2, big_user, big_item, key_layer, memory,
                               block_rows=32, compute_dtype=jnp.float32)
    jax.block_until_ready(out2)
    assert out2.shape == (batch2,)
    assert jnp.allclose(out2, ref2, atol=1e-3, rtol=1e-3), (out2, ref2)

    print("KERNEL_OK")
</pallas_src>

<mosaic_0001>
module attributes {stable_mosaic.version = 11 : i64} {
  func.func @lrml_kernel(%arg0: i32, %arg1: memref<8x128xf32, #tpu.memory_space<vmem>>, %arg2: memref<8x128xf32, #tpu.memory_space<vmem>>, %arg3: memref<128x32xf32, #tpu.memory_space<vmem>>, %arg4: memref<32x128xf32, #tpu.memory_space<vmem>>, %arg5: memref<128x4xf32, #tpu.memory_space<vmem>>, %arg6: memref<4x128xf32, #tpu.memory_space<vmem>>, %arg7: memref<32x4xf32, #tpu.memory_space<vmem>>, %arg8: memref<4x32xf32, #tpu.memory_space<vmem>>, %arg9: memref<8x4xf32, #tpu.memory_space<vmem>>) attributes {dimension_semantics = [#tpu.dimension_semantics<parallel>], iteration_bounds = array<i64: 1>, scalar_prefetch = 0 : i64, scratch_operands = 0 : i64, tpu.core_type = #tpu.core_type<tc>, window_params = [{transform_indices = @transform_0, window_bounds = array<i64: 8, 128>}, {transform_indices = @transform_1, window_bounds = array<i64: 8, 128>}, {pipeline_mode = #tpu.pipeline_mode<synchronous>, transform_indices = @transform_2, window_bounds = array<i64: 128, 32>}, {pipeline_mode = #tpu.pipeline_mode<synchronous>, transform_indices = @transform_3, window_bounds = array<i64: 32, 128>}, {pipeline_mode = #tpu.pipeline_mode<synchronous>, transform_indices = @transform_4, window_bounds = array<i64: 128, 4>}, {pipeline_mode = #tpu.pipeline_mode<synchronous>, transform_indices = @transform_5, window_bounds = array<i64: 4, 128>}, {pipeline_mode = #tpu.pipeline_mode<synchronous>, transform_indices = @transform_6, window_bounds = array<i64: 32, 4>}, {pipeline_mode = #tpu.pipeline_mode<synchronous>, transform_indices = @transform_7, window_bounds = array<i64: 4, 32>}, {transform_indices = @transform_8, window_bounds = array<i64: 8, 4>}]} {
    %c0 = arith.constant 0 : index
    %c0_0 = arith.constant 0 : index
    %0 = vector.load %arg1[%c0, %c0_0] : memref<8x128xf32, #tpu.memory_space<vmem>>, vector<8x128xf32>
    %c0_1 = arith.constant 0 : index
    %c0_2 = arith.constant 0 : index
    %1 = vector.load %arg2[%c0_1, %c0_2] : memref<8x128xf32, #tpu.memory_space<vmem>>, vector<8x128xf32>
    %c0_3 = arith.constant 0 : index
    %c0_4 = arith.constant 0 : index
    %2 = vector.load %arg5[%c0_3, %c0_4] : memref<128x4xf32, #tpu.memory_space<vmem>>, vector<128x4xf32>
    %c0_5 = arith.constant 0 : index
    %c0_6 = arith.constant 0 : index
    %3 = vector.load %arg6[%c0_5, %c0_6] : memref<4x128xf32, #tpu.memory_space<vmem>>, vector<4x128xf32>
    %c0_7 = arith.constant 0 : index
    %c0_8 = arith.constant 0 : index
    %4 = vector.load %arg7[%c0_7, %c0_8] : memref<32x4xf32, #tpu.memory_space<vmem>>, vector<32x4xf32>
    %c0_9 = arith.constant 0 : index
    %c0_10 = arith.constant 0 : index
    %5 = vector.load %arg8[%c0_9, %c0_10] : memref<4x32xf32, #tpu.memory_space<vmem>>, vector<4x32xf32>
    %6 = arith.mulf %0, %0 : vector<8x128xf32>
    %cst = arith.constant dense<0.000000e+00> : vector<8x4xf32>
    %7 = tpu.matmul %6, %2, %cst {dimension_numbers = #tpu.dot_dimension_numbers<[1], [0], [0], [1], [0, 0, 1, 1], [], []>} : vector<8x128xf32>, vector<128x4xf32>, vector<8x4xf32> -> vector<8x4xf32>
    %8 = arith.mulf %1, %1 : vector<8x128xf32>
    %cst_11 = arith.constant dense<0.000000e+00> : vector<8x4xf32>
    %9 = tpu.matmul %8, %2, %cst_11 {dimension_numbers = #tpu.dot_dimension_numbers<[1], [0], [0], [1], [0, 0, 1, 1], [], []>} : vector<8x128xf32>, vector<128x4xf32>, vector<8x4xf32> -> vector<8x4xf32>
    %cst_12 = arith.constant 9.99999996E-13 : f32
    %10 = vector.broadcast %cst_12 : f32 to vector<8x4xf32>
    %11 = arith.addf %7, %10 : vector<8x4xf32>
    %12 = math.rsqrt %11 : vector<8x4xf32>
    %cst_13 = arith.constant 2.000000e+00 : f32
    %13 = vector.broadcast %cst_13 : f32 to vector<8x4xf32>
    %14 = arith.mulf %13, %12 : vector<8x4xf32>
    %cst_14 = arith.constant 1.000000e+00 : f32
    %15 = vector.broadcast %cst_14 : f32 to vector<8x4xf32>
    %16 = arith.minimumf %14, %15 : vector<8x4xf32>
    %cst_15 = arith.constant 9.99999996E-13 : f32
    %17 = vector.broadcast %cst_15 : f32 to vector<8x4xf32>
    %18 = arith.addf %9, %17 : vector<8x4xf32>
    %19 = math.rsqrt %18 : vector<8x4xf32>
    %cst_16 = arith.constant 2.000000e+00 : f32
    %20 = vector.broadcast %cst_16 : f32 to vector<8x4xf32>
    %21 = arith.mulf %20, %19 : vector<8x4xf32>
    %cst_17 = arith.constant 1.000000e+00 : f32
    %22 = vector.broadcast %cst_17 : f32 to vector<8x4xf32>
    %23 = arith.minimumf %21, %22 : vector<8x4xf32>
    %cst_18 = arith.constant dense<0.000000e+00> : vector<8x128xf32>
    %24 = tpu.matmul %16, %3, %cst_18 {dimension_numbers = #tpu.dot_dimension_numbers<[1], [0], [0], [1], [0, 0, 1, 1], [], []>} : vector<8x4xf32>, vector<4x128xf32>, vector<8x128xf32> -> vector<8x128xf32>
    %cst_19 = arith.constant dense<0.000000e+00> : vector<8x128xf32>
    %25 = tpu.matmul %23, %3, %cst_19 {dimension_numbers = #tpu.dot_dimension_numbers<[1], [0], [0], [1], [0, 0, 1, 1], [], []>} : vector<8x4xf32>, vector<4x128xf32>, vector<8x128xf32> -> vector<8x128xf32>
    %26 = arith.mulf %0, %24 : vector<8x128xf32>
    %27 = arith.mulf %1, %25 : vector<8x128xf32>
    %28 = arith.mulf %26, %27 : vector<8x128xf32>
    %c0_20 = arith.constant 0 : index
    %c0_21 = arith.constant 0 : index
    %29 = vector.load %arg3[%c0_20, %c0_21] : memref<128x32xf32, #tpu.memory_space<vmem>>, vector<128x32xf32>
    %cst_22 = arith.constant dense<0.000000e+00> : vector<8x32xf32>
    %30 = tpu.matmul %28, %29, %cst_22 {dimension_numbers = #tpu.dot_dimension_numbers<[1], [0], [0], [1], [0, 0, 1, 1], [], []>} : vector<8x128xf32>, vector<128x32xf32>, vector<8x32xf32> -> vector<8x32xf32>
    %cst_23 = arith.constant dense<0xFF800000> : vector<8xf32>
    %31 = vector.multi_reduction <maximumf>, %30, %cst_23 [1] : vector<8x32xf32> to vector<8xf32>
    %32 = vector.shape_cast %31 : vector<8xf32> to vector<8x1xf32>
    %33 = vector.broadcast %32 : vector<8x1xf32> to vector<8x32xf32>
    %34 = arith.subf %30, %33 : vector<8x32xf32>
    %35 = math.exp %34 : vector<8x32xf32>
    %cst_24 = arith.constant dense<0.000000e+00> : vector<8x4xf32>
    %36 = tpu.matmul %35, %4, %cst_24 {dimension_numbers = #tpu.dot_dimension_numbers<[1], [0], [0], [1], [0, 0, 1, 1], [], []>} : vector<8x32xf32>, vector<32x4xf32>, vector<8x4xf32> -> vector<8x4xf32>
    %37 = tpu.reciprocal %36 : vector<8x4xf32> -> vector<8x4xf32>
    %cst_25 = arith.constant dense<0.000000e+00> : vector<8x32xf32>
    %38 = tpu.matmul %37, %5, %cst_25 {dimension_numbers = #tpu.dot_dimension_numbers<[1], [0], [0], [1], [0, 0, 1, 1], [], []>} : vector<8x4xf32>, vector<4x32xf32>, vector<8x32xf32> -> vector<8x32xf32>
    %39 = arith.mulf %35, %38 : vector<8x32xf32>
    %c0_26 = arith.constant 0 : index
    %c0_27 = arith.constant 0 : index
    %40 = vector.load %arg4[%c0_26, %c0_27] : memref<32x128xf32, #tpu.memory_space<vmem>>, vector<32x128xf32>
    %cst_28 = arith.constant dense<0.000000e+00> : vector<8x128xf32>
    %41 = tpu.matmul %39, %40, %cst_28 {dimension_numbers = #tpu.dot_dimension_numbers<[1], [0], [0], [1], [0, 0, 1, 1], [], []>} : vector<8x32xf32>, vector<32x128xf32>, vector<8x128xf32> -> vector<8x128xf32>
    %42 = arith.addf %26, %41 : vector<8x128xf32>
    %43 = arith.subf %42, %27 : vector<8x128xf32>
    %44 = arith.mulf %43, %43 : vector<8x128xf32>
    %cst_29 = arith.constant dense<0.000000e+00> : vector<8x4xf32>
    %45 = tpu.matmul %44, %2, %cst_29 {dimension_numbers = #tpu.dot_dimension_numbers<[1], [0], [0], [1], [0, 0, 1, 1], [], []>} : vector<8x128xf32>, vector<128x4xf32>, vector<8x4xf32> -> vector<8x4xf32>
    %cst_30 = arith.constant 1.000000e-03 : f32
    %46 = vector.broadcast %cst_30 : f32 to vector<8x4xf32>
    %47 = arith.addf %45, %46 : vector<8x4xf32>
    %48 = math.sqrt %47 : vector<8x4xf32>
    %cst_31 = arith.constant 0.000000e+00 : f32
    %49 = vector.broadcast %cst_31 : f32 to vector<8x4xf32>
    %50 = arith.subf %49, %48 : vector<8x4xf32>
    %c0_32 = arith.constant 0 : index
    %c0_33 = arith.constant 0 : index
    %51 = vector.load %arg9[%c0_32, %c0_33] : memref<8x4xf32, #tpu.memory_space<vmem>>, vector<8x4xf32>
    tpu.vector_store %arg9[%c0_32, %c0_33], %50 {strides = array<i32>} : memref<8x4xf32, #tpu.memory_space<vmem>>, vector<8x4xf32>,
    return
  }
  func.func @transform_0(%arg0: i32) -> (i32, i32) {
    %c0_i32 = arith.constant 0 : i32
    %c0_i32_0 = arith.constant 0 : i32
    return %arg0, %c0_i32 : i32, i32
  }
  func.func @transform_1(%arg0: i32) -> (i32, i32) {
    %c0_i32 = arith.constant 0 : i32
    %c0_i32_0 = arith.constant 0 : i32
    return %arg0, %c0_i32 : i32, i32
  }
  func.func @transform_2(%arg0: i32) -> (i32, i32) {
    %c0_i32 = arith.constant 0 : i32
    %c0_i32_0 = arith.constant 0 : i32
    %c0_i32_1 = arith.constant 0 : i32
    return %c0_i32, %c0_i32_0 : i32, i32
  }
  func.func @transform_3(%arg0: i32) -> (i32, i32) {
    %c0_i32 = arith.constant 0 : i32
    %c0_i32_0 = arith.constant 0 : i32
    %c0_i32_1 = arith.constant 0 : i32
    return %c0_i32, %c0_i32_0 : i32, i32
  }
  func.func @transform_4(%arg0: i32) -> (i32, i32) {
    %c0_i32 = arith.constant 0 : i32
    %c0_i32_0 = arith.constant 0 : i32
    %c0_i32_1 = arith.constant 0 : i32
    return %c0_i32, %c0_i32_0 : i32, i32
  }
  func.func @transform_5(%arg0: i32) -> (i32, i32) {
    %c0_i32 = arith.constant 0 : i32
    %c0_i32_0 = arith.constant 0 : i32
    %c0_i32_1 = arith.constant 0 : i32
    return %c0_i32, %c0_i32_0 : i32, i32
  }
  func.func @transform_6(%arg0: i32) -> (i32, i32) {
    %c0_i32 = arith.constant 0 : i32
    %c0_i32_0 = arith.constant 0 : i32
    %c0_i32_1 = arith.constant 0 : i32
    return %c0_i32, %c0_i32_0 : i32, i32
  }
  func.func @transform_7(%arg0: i32) -> (i32, i32) {
    %c0_i32 = arith.constant 0 : i32
    %c0_i32_0 = arith.constant 0 : i32
    %c0_i32_1 = arith.constant 0 : i32
    return %c0_i32, %c0_i32_0 : i32, i32
  }
  func.func @transform_8(%arg0: i32) -> (i32, i32) {
    %c0_i32 = arith.constant 0 : i32
    %c0_i32_0 = arith.constant 0 : i32
    return %arg0, %c0_i32 : i32, i32
  }
}

</mosaic_0001>

<llo_original>
// kernel: tpu_custom_call.1
$region0: #{tpu_custom_call.1}
  #allocation0 [shape = 'u32[]', space=smem, size = 0x4, offset = 0x4, fixed_abs, tag = 'smem constant byte address 0x4 - core index']
  #allocation1 [shape = 'u32[144,128]{1,0:T(1,128)}', space=vmem, size = 0x12000, scoped, tag = 'internal scratch']
  %s0 = inlined_call_operand.vmem [shape: f32[8,128], index: 0, kind: input, shape index: {}]
  %s1 = inlined_call_operand.vmem [shape: f32[8,128], index: 1, kind: input, shape index: {}]
  %s2 = inlined_call_operand.vmem [shape: f32[128,32], index: 2, kind: input, shape index: {}]
  %s3 = inlined_call_operand.vmem [shape: f32[32,128], index: 3, kind: input, shape index: {}]
  %s4 = inlined_call_operand.vmem [shape: f32[128,4], index: 4, kind: input, shape index: {}]
  %s5 = inlined_call_operand.vmem [shape: f32[4,128], index: 5, kind: input, shape index: {}]
  %s6 = inlined_call_operand.vmem [shape: f32[32,4], index: 6, kind: input, shape index: {}]
  %s7 = inlined_call_operand.vmem [shape: f32[4,32], index: 7, kind: input, shape index: {}]
  %s8 = inlined_call_operand.vmem [shape: f32[8,4], index: 8, kind: output, shape index: {}]
  %s9 = sld [smem:[#allocation0]]
  $region42: #{tpu_custom_call.1} parent=0
    _
  %s11 = ssub.s32 1, %s9
  %s12 = scalar_select 0, %s11, %s9
  // Predicated region
  $region2: #{tpu_custom_call.1} parent=0 // pred_check
    _
  $region3: #{tpu_custom_call.1} parent=0 // pred_check_branch
    %14 = sbr.rel (0) target = $region5
  $region4: #{tpu_custom_call.1} parent=0 // pred_region
    _
  $region5: #{tpu_custom_call.1} parent=0 // pred_fallthru
    _
  // Predicated region
  $region6: #{tpu_custom_call.1} parent=0 // pred_check
    _
  $region7: #{tpu_custom_call.1} parent=0 // pred_check_branch
    %16 = sbr.rel (0) target = $region9
  $region8: #{tpu_custom_call.1} parent=0 // pred_region
    _
  $region9: #{tpu_custom_call.1} parent=0 // pred_fallthru
    _
  // Predicated region
  $region10: #{tpu_custom_call.1} parent=0 // pred_check
    _
  $region11: #{tpu_custom_call.1} parent=0 // pred_check_branch
    %18 = sbr.rel (0) target = $region13
  $region12: #{tpu_custom_call.1} parent=0 // pred_region
    _
  $region13: #{tpu_custom_call.1} parent=0 // pred_fallthru
    _
  // Predicated region
  $region14: #{tpu_custom_call.1} parent=0 // pred_check
    _
  $region15: #{tpu_custom_call.1} parent=0 // pred_check_branch
    %20 = sbr.rel (0) target = $region17
  $region16: #{tpu_custom_call.1} parent=0 // pred_region
    _
  $region17: #{tpu_custom_call.1} parent=0 // pred_fallthru
    _
  // Predicated region
  $region18: #{tpu_custom_call.1} parent=0 // pred_check
    _
  $region19: #{tpu_custom_call.1} parent=0 // pred_check_branch
    %22 = sbr.rel (0) target = $region21
  $region20: #{tpu_custom_call.1} parent=0 // pred_region
    _
  $region21: #{tpu_custom_call.1} parent=0 // pred_fallthru
    _
  // Predicated region
  $region22: #{tpu_custom_call.1} parent=0 // pred_check
    _
  $region23: #{tpu_custom_call.1} parent=0 // pred_check_branch
    %24 = sbr.rel (0) target = $region25
  $region24: #{tpu_custom_call.1} parent=0 // pred_region
    _
  $region25: #{tpu_custom_call.1} parent=0 // pred_fallthru
    _
  // Predicated region
  $region26: #{tpu_custom_call.1} parent=0 // pred_check
    _
  $region27: #{tpu_custom_call.1} parent=0 // pred_check_branch
    %26 = sbr.rel (0) target = $region29
  $region28: #{tpu_custom_call.1} parent=0 // pred_region
    _
  $region29: #{tpu_custom_call.1} parent=0 // pred_fallthru
    _
  // Predicated region
  $region30: #{tpu_custom_call.1} parent=0 // pred_check
    _
  $region31: #{tpu_custom_call.1} parent=0 // pred_check_branch
    %28 = sbr.rel (0) target = $region33
  $region32: #{tpu_custom_call.1} parent=0 // pred_region
    _
  $region33: #{tpu_custom_call.1} parent=0 // pred_fallthru
    _
  %v29 = vld [vmem:[%s0] sm:$0xff]
  %v30 = vld [vmem:[%s1] sm:$0xff]
  %v31 = vld [vmem:[%s4] sm:$0xff]
  %v32 = vld [vmem:[%s4 + $0x8] sm:$0xff]
  %v33 = vld [vmem:[%s4 + $0x10] sm:$0xff]
  %v34 = vld [vmem:[%s4 + $0x18] sm:$0xff]
  %v35 = vld [vmem:[%s4 + $0x20] sm:$0xff]
  %v36 = vld [vmem:[%s4 + $0x28] sm:$0xff]
  %v37 = vld [vmem:[%s4 + $0x30] sm:$0xff]
  %v38 = vld [vmem:[%s4 + $0x38] sm:$0xff]
  %v39 = vld [vmem:[%s4 + $0x40] sm:$0xff]
  %v40 = vld [vmem:[%s4 + $0x48] sm:$0xff]
  %v41 = vld [vmem:[%s4 + $0x50] sm:$0xff]
  %v42 = vld [vmem:[%s4 + $0x58] sm:$0xff]
  %v43 = vld [vmem:[%s4 + $0x60] sm:$0xff]
  %v44 = vld [vmem:[%s4 + $0x68] sm:$0xff]
  %v45 = vld [vmem:[%s4 + $0x70] sm:$0xff]
  %v46 = vld [vmem:[%s4 + $0x78] sm:$0xff]
  %v47 = vld [vmem:[%s5] sm:$0xf]
  %v48 = vld [vmem:[%s6] sm:$0xff]
  %v49 = vld [vmem:[%s6 + $0x8] sm:$0xff]
  %v50 = vld [vmem:[%s6 + $0x10] sm:$0xff]
  %v51 = vld [vmem:[%s6 + $0x18] sm:$0xff]
  %v52 = vld [vmem:[%s7] sm:$0xf]
  %v53 = vmul.f32 %v29, %v29
  %v54 = vmul.f32 %v30, %v30
  %55 = vmatprep.subr.mxu0 0.0
  %56 = vmatpush1.msra.mxu0 %v31
  %57 = vmatprep.subr.mxu0 0.0
  %58 = vmatpush1.msra.mxu0 %v32
  %59 = vmatprep.subr.mxu0 0.0
  %60 = vmatpush1.msra.mxu0 %v33
  %61 = vmatprep.subr.mxu0 0.0
  %62 = vmatpush1.msra.mxu0 %v34
  %63 = vmatprep.subr.mxu0 0.0
  %64 = vmatpush1.msra.mxu0 %v35
  %65 = vmatprep.subr.mxu0 0.0
  %66 = vmatpush1.msra.mxu0 %v36
  %67 = vmatprep.subr.mxu0 0.0
  %68 = vmatpush1.msra.mxu0 %v37
  %69 = vmatprep.subr.mxu0 0.0
  %70 = vmatpush1.msra.mxu0 %v38
  %71 = vmatprep.subr.mxu0 0.0
  %72 = vmatpush1.msra.mxu0 %v39
  %73 = vmatprep.subr.mxu0 0.0
  %74 = vmatpush1.msra.mxu0 %v40
  %75 = vmatprep.subr.mxu0 0.0
  %76 = vmatpush1.msra.mxu0 %v41
  %77 = vmatprep.subr.mxu0 0.0
  %78 = vmatpush1.msra.mxu0 %v42
  %79 = vmatprep.subr.mxu0 0.0
  %80 = vmatpush1.msra.mxu0 %v43
  %81 = vmatprep.subr.mxu0 0.0
  %82 = vmatpush1.msra.mxu0 %v44
  %83 = vmatprep.subr.mxu0 0.0
  %84 = vmatpush1.msra.mxu0 %v45
  %85 = vmatprep.subr.mxu0 0.0
  %86 = vmatpush1.msra.mxu0 %v46
  %87 = vmatprep.subr.mxu0 0.0
  %88 = vmatpush1.msra.mxu0 0.0
  %89 = vmatprep.subr.mxu0 0.0
  %90 = vmatpush1.msra.mxu0 0.0
  %91 = vmatprep.subr.mxu0 0.0
  %92 = vmatpush1.msra.mxu0 0.0
  %93 = vmatprep.subr.mxu0 0.0
  %94 = vmatpush1.msra.mxu0 0.0
  %95 = vmatprep.subr.mxu0 0.0
  %96 = vmatpush1.msra.mxu0 0.0
  %97 = vmatprep.subr.mxu0 0.0
  %98 = vmatpush1.msra.mxu0 0.0
  %99 = vmatprep.subr.mxu0 0.0
  %100 = vmatpush1.msra.mxu0 0.0
  %101 = vmatprep.subr.mxu0 0.0
  %102 = vmatpush1.msra.mxu0 0.0
  %103 = vmatprep.subr.mxu0 0.0
  %104 = vmatpush1.msra.mxu0 0.0
  %105 = vmatprep.subr.mxu0 0.0
  %106 = vmatpush1.msra.mxu0 0.0
  %107 = vmatprep.subr.mxu0 0.0
  %108 = vmatpush1.msra.mxu0 0.0
  %109 = vmatprep.subr.mxu0 0.0
  %110 = vmatpush1.msra.mxu0 0.0
  %111 = vmatprep.subr.mxu0 0.0
  %112 = vmatpush1.msra.mxu0 0.0
  %113 = vmatprep.subr.mxu0 0.0
  %114 = vmatpush1.msra.mxu0 0.0
  %115 = vmatprep.subr.mxu0 0.0
  %116 = vmatpush1.msra.mxu0 0.0
  %117 = vmatprep.subr.mxu0 0.0
  %118 = vmatpush1.msra.mxu0 0.0
  %119 = vmatprep.mubr.f32.mxu0 0.0
  %120 = vmatmul.mubr.f32.gmra.mrb[0].mxu0 %v53
  %v121 = vpop.f32.mrb[0].mxu0
  %v122 = vadd.f32 1e-12, %v121
  %v123 = vpop.f32.mrb[0].mxu0
  %124 = vdwg.mxu0
  %v125 = vrsqrt.pop %v122
  %v126 = vmul.f32 %v125, 2.0
  %v127 = vmin.f32 %v126, 1.0
  %128 = vmatprep.subr.mxu0 0.0
  %129 = vmatpush1.msra.mxu0 %v31
  %130 = vmatprep.subr.mxu0 0.0
  %131 = vmatpush1.msra.mxu0 %v32
  %132 = vmatprep.subr.mxu0 0.0
  %133 = vmatpush1.msra.mxu0 %v33
  %134 = vmatprep.subr.mxu0 0.0
  %135 = vmatpush1.msra.mxu0 %v34
  %136 = vmatprep.subr.mxu0 0.0
  %137 = vmatpush1.msra.mxu0 %v35
  %138 = vmatprep.subr.mxu0 0.0
  %139 = vmatpush1.msra.mxu0 %v36
  %140 = vmatprep.subr.mxu0 0.0
  %141 = vmatpush1.msra.mxu0 %v37
  %142 = vmatprep.subr.mxu0 0.0
  %143 = vmatpush1.msra.mxu0 %v38
  %144 = vmatprep.subr.mxu0 0.0
  %145 = vmatpush1.msra.mxu0 %v39
  %146 = vmatprep.subr.mxu0 0.0
  %147 = vmatpush1.msra.mxu0 %v40
  %148 = vmatprep.subr.mxu0 0.0
  %149 = vmatpush1.msra.mxu0 %v41
  %150 = vmatprep.subr.mxu0 0.0
  %151 = vmatpush1.msra.mxu0 %v42
  %152 = vmatprep.subr.mxu0 0.0
  %153 = vmatpush1.msra.mxu0 %v43
  %154 = vmatprep.subr.mxu0 0.0
  %155 = vmatpush1.msra.mxu0 %v44
  %156 = vmatprep.subr.mxu0 0.0
  %157 = vmatpush1.msra.mxu0 %v45
  %158 = vmatprep.subr.mxu0 0.0
  %159 = vmatpush1.msra.mxu0 %v46
  %160 = vmatprep.subr.mxu0 0.0
  %161 = vmatpush1.msra.mxu0 0.0
  %162 = vmatprep.subr.mxu0 0.0
  %163 = vmatpush1.msra.mxu0 0.0
  %164 = vmatprep.subr.mxu0 0.0
  %165 = vmatpush1.msra.mxu0 0.0
  %166 = vmatprep.subr.mxu0 0.0
  %167 = vmatpush1.msra.mxu0 0.0
  %168 = vmatprep.subr.mxu0 0.0
  %169 = vmatpush1.msra.mxu0 0.0
  %170 = vmatprep.subr.mxu0 0.0
  %171 = vmatpush1.msra.mxu0 0.0
  %172 = vmatprep.subr.mxu0 0.0
  %173 = vmatpush1.msra.mxu0 0.0
  %174 = vmatprep.subr.mxu0 0.0
  %175 = vmatpush1.msra.mxu0 0.0
  %176 = vmatprep.subr.mxu0 0.0
  %177 = vmatpush1.msra.mxu0 0.0
  %178 = vmatprep.subr.mxu0 0.0
  %179 = vmatpush1.msra.mxu0 0.0
  %180 = vmatprep.subr.mxu0 0.0
  %181 = vmatpush1.msra.mxu0 0.0
  %182 = vmatprep.subr.mxu0 0.0
  %183 = vmatpush1.msra.mxu0 0.0
  %184 = vmatprep.subr.mxu0 0.0
  %185 = vmatpush1.msra.mxu0 0.0
  %186 = vmatprep.subr.mxu0 0.0
  %187 = vmatpush1.msra.mxu0 0.0
  %188 = vmatprep.subr.mxu0 0.0
  %189 = vmatpush1.msra.mxu0 0.0
  %190 = vmatprep.subr.mxu0 0.0
  %191 = vmatpush1.msra.mxu0 0.0
  %192 = vmatprep.mubr.f32.mxu0 0.0
  %193 = vmatmul.mubr.f32.gmra.mrb[0].mxu0 %v54
  %v194 = vpop.f32.mrb[0].mxu0
  %v195 = vadd.f32 1e-12, %v194
  %v196 = vpop.f32.mrb[0].mxu0
  %197 = vdwg.mxu0
  %v198 = vrsqrt.pop %v195
  %v199 = vmul.f32 %v198, 2.0
  %v200 = vmin.f32 %v199, 1.0
  %vm201 = vcmask 31744
  %v203 = vsel %vm201, %v127, 0
  %vm205 = vcmask 1043456
  %v207 = vsel %vm205, %v47, 0
  %209 = vmatprep.subr.mxu0 0.0
  %210 = vmatpush1.msra.mxu0 %v207
  %211 = vmatprep.subr.mxu0 0.0
  %212 = vmatpush1.msra.mxu0 0.0
  %213 = vmatprep.subr.mxu0 0.0
  %214 = vmatpush1.msra.mxu0 0.0
  %215 = vmatprep.subr.mxu0 0.0
  %216 = vmatpush1.msra.mxu0 0.0
  %217 = vmatprep.subr.mxu0 0.0
  %218 = vmatpush1.msra.mxu0 0.0
  %219 = vmatprep.subr.mxu0 0.0
  %220 = vmatpush1.msra.mxu0 0.0
  %221 = vmatprep.subr.mxu0 0.0
  %222 = vmatpush1.msra.mxu0 0.0
  %223 = vmatprep.subr.mxu0 0.0
  %224 = vmatpush1.msra.mxu0 0.0
  %225 = vmatprep.subr.mxu0 0.0
  %226 = vmatpush1.msra.mxu0 0.0
  %227 = vmatprep.subr.mxu0 0.0
  %228 = vmatpush1.msra.mxu0 0.0
  %229 = vmatprep.subr.mxu0 0.0
  %230 = vmatpush1.msra.mxu0 0.0
  %231 = vmatprep.subr.mxu0 0.0
  %232 = vmatpush1.msra.mxu0 0.0
  %233 = vmatprep.subr.mxu0 0.0
  %234 = vmatpush1.msra.mxu0 0.0
  %235 = vmatprep.subr.mxu0 0.0
  %236 = vmatpush1.msra.mxu0 0.0
  %237 = vmatprep.subr.mxu0 0.0
  %238 = vmatpush1.msra.mxu0 0.0
  %239 = vmatprep.subr.mxu0 0.0
  %240 = vmatpush1.msra.mxu0 0.0
  %241 = vmatprep.subr.mxu0 0.0
  %242 = vmatpush1.msra.mxu0 0.0
  %243 = vmatprep.subr.mxu0 0.0
  %244 = vmatpush1.msra.mxu0 0.0
  %245 = vmatprep.subr.mxu0 0.0
  %246 = vmatpush1.msra.mxu0 0.0
  %247 = vmatprep.subr.mxu0 0.0
  %248 = vmatpush1.msra.mxu0 0.0
  %249 = vmatprep.subr.mxu0 0.0
  %250 = vmatpush1.msra.mxu0 0.0
  %251 = vmatprep.subr.mxu0 0.0
  %252 = vmatpush1.msra.mxu0 0.0
  %253 = vmatprep.subr.mxu0 0.0
  %254 = vmatpush1.msra.mxu0 0.0
  %255 = vmatprep.subr.mxu0 0.0
  %256 = vmatpush1.msra.mxu0 0.0
  %257 = vmatprep.subr.mxu0 0.0
  %258 = vmatpush1.msra.mxu0 0.0
  %259 = vmatprep.subr.mxu0 0.0
  %260 = vmatpush1.msra.mxu0 0.0
  %261 = vmatprep.subr.mxu0 0.0
  %262 = vmatpush1.msra.mxu0 0.0
  %263 = vmatprep.subr.mxu0 0.0
  %264 = vmatpush1.msra.mxu0 0.0
  %265 = vmatprep.subr.mxu0 0.0
  %266 = vmatpush1.msra.mxu0 0.0
  %267 = vmatprep.subr.mxu0 0.0
  %268 = vmatpush1.msra.mxu0 0.0
  %269 = vmatprep.subr.mxu0 0.0
  %270 = vmatpush1.msra.mxu0 0.0
  %271 = vmatprep.subr.mxu0 0.0
  %272 = vmatpush1.msra.mxu0 0.0
  %273 = vmatprep.mubr.f32.mxu0 0.0
  %274 = vmatmul.mubr.f32.gmra.mrb[0].mxu0 %v203
  %v275 = vpop.f32.mrb[0].mxu0
  %v276 = vadd.f32 0.0, %v275
  %v277 = vpop.f32.mrb[0].mxu0
  %278 = vdwg.mxu0
  %v280 = vsel %vm201, %v200, 0
  %282 = vmatprep.subr.mxu0 0.0
  %283 = vmatpush1.msra.mxu0 %v207
  %284 = vmatprep.subr.mxu0 0.0
  %285 = vmatpush1.msra.mxu0 0.0
  %286 = vmatprep.subr.mxu0 0.0
  %287 = vmatpush1.msra.mxu0 0.0
  %288 = vmatprep.subr.mxu0 0.0
  %289 = vmatpush1.msra.mxu0 0.0
  %290 = vmatprep.subr.mxu0 0.0
  %291 = vmatpush1.msra.mxu0 0.0
  %292 = vmatprep.subr.mxu0 0.0
  %293 = vmatpush1.msra.mxu0 0.0
  %294 = vmatprep.subr.mxu0 0.0
  %295 = vmatpush1.msra.mxu0 0.0
  %296 = vmatprep.subr.mxu0 0.0
  %297 = vmatpush1.msra.mxu0 0.0
  %298 = vmatprep.subr.mxu0 0.0
  %299 = vmatpush1.msra.mxu0 0.0
  %300 = vmatprep.subr.mxu0 0.0
  %301 = vmatpush1.msra.mxu0 0.0
  %302 = vmatprep.subr.mxu0 0.0
  %303 = vmatpush1.msra.mxu0 0.0
  %304 = vmatprep.subr.mxu0 0.0
  %305 = vmatpush1.msra.mxu0 0.0
  %306 = vmatprep.subr.mxu0 0.0
  %307 = vmatpush1.msra.mxu0 0.0
  %308 = vmatprep.subr.mxu0 0.0
  %309 = vmatpush1.msra.mxu0 0.0
  %310 = vmatprep.subr.mxu0 0.0
  %311 = vmatpush1.msra.mxu0 0.0
  %312 = vmatprep.subr.mxu0 0.0
  %313 = vmatpush1.msra.mxu0 0.0
  %314 = vmatprep.subr.mxu0 0.0
  %315 = vmatpush1.msra.mxu0 0.0
  %316 = vmatprep.subr.mxu0 0.0
  %317 = vmatpush1.msra.mxu0 0.0
  %318 = vmatprep.subr.mxu0 0.0
  %319 = vmatpush1.msra.mxu0 0.0
  %320 = vmatprep.subr.mxu0 0.0
  %321 = vmatpush1.msra.mxu0 0.0
  %322 = vmatprep.subr.mxu0 0.0
  %323 = vmatpush1.msra.mxu0 0.0
  %324 = vmatprep.subr.mxu0 0.0
  %325 = vmatpush1.msra.mxu0 0.0
  %326 = vmatprep.subr.mxu0 0.0
  %327 = vmatpush1.msra.mxu0 0.0
  %328 = vmatprep.subr.mxu0 0.0
  %329 = vmatpush1.msra.mxu0 0.0
  %330 = vmatprep.subr.mxu0 0.0
  %331 = vmatpush1.msra.mxu0 0.0
  %332 = vmatprep.subr.mxu0 0.0
  %333 = vmatpush1.msra.mxu0 0.0
  %334 = vmatprep.subr.mxu0 0.0
  %335 = vmatpush1.msra.mxu0 0.0
  %336 = vmatprep.subr.mxu0 0.0
  %337 = vmatpush1.msra.mxu0 0.0
  %338 = vmatprep.subr.mxu0 0.0
  %339 = vmatpush1.msra.mxu0 0.0
  %340 = vmatprep.subr.mxu0 0.0
  %341 = vmatpush1.msra.mxu0 0.0
  %342 = vmatprep.subr.mxu0 0.0
  %343 = vmatpush1.msra.mxu0 0.0
  %344 = vmatprep.subr.mxu0 0.0
  %345 = vmatpush1.msra.mxu0 0.0
  %346 = vmatprep.mubr.f32.mxu0 0.0
  %347 = vmatmul.mubr.f32.gmra.mrb[0].mxu0 %v280
  %v348 = vpop.f32.mrb[0].mxu0
  %v349 = vadd.f32 0.0, %v348
  %v350 = vpop.f32.mrb[0].mxu0
  %351 = vdwg.mxu0
  %v352 = vmul.f32 %v29, %v276
  %v353 = vmul.f32 %v30, %v349
  %v354 = vmul.f32 %v352, %v353
  %v355 = vld [vmem:[%s2] sm:$0xff]
  %v356 = vld [vmem:[%s2 + $0x8] sm:$0xff]
  %v357 = vld [vmem:[%s2 + $0x10] sm:$0xff]
  %v358 = vld [vmem:[%s2 + $0x18] sm:$0xff]
  %v359 = vld [vmem:[%s2 + $0x20] sm:$0xff]
  %v360 = vld [vmem:[%s2 + $0x28] sm:$0xff]
  %v361 = vld [vmem:[%s2 + $0x30] sm:$0xff]
  %v362 = vld [vmem:[%s2 + $0x38] sm:$0xff]
  %v363 = vld [vmem:[%s2 + $0x40] sm:$0xff]
  %v364 = vld [vmem:[%s2 + $0x48] sm:$0xff]
  %v365 = vld [vmem:[%s2 + $0x50] sm:$0xff]
  %v366 = vld [vmem:[%s2 + $0x58] sm:$0xff]
  %v367 = vld [vmem:[%s2 + $0x60] sm:$0xff]
  %v368 = vld [vmem:[%s2 + $0x68] sm:$0xff]
  %v369 = vld [vmem:[%s2 + $0x70] sm:$0xff]
  %v370 = vld [vmem:[%s2 + $0x78] sm:$0xff]
  %371 = vmatprep.subr.mxu0 0.0
  %372 = vmatpush1.msra.mxu0 %v355
  %373 = vmatprep.subr.mxu0 0.0
  %374 = vmatpush1.msra.mxu0 %v356
  %375 = vmatprep.subr.mxu0 0.0
  %376 = vmatpush1.msra.mxu0 %v357
  %377 = vmatprep.subr.mxu0 0.0
  %378 = vmatpush1.msra.mxu0 %v358
  %379 = vmatprep.subr.mxu0 0.0
  %380 = vmatpush1.msra.mxu0 %v359
  %381 = vmatprep.subr.mxu0 0.0
  %382 = vmatpush1.msra.mxu0 %v360
  %383 = vmatprep.subr.mxu0 0.0
  %384 = vmatpush1.msra.mxu0 %v361
  %385 = vmatprep.subr.mxu0 0.0
  %386 = vmatpush1.msra.mxu0 %v362
  %387 = vmatprep.subr.mxu0 0.0
  %388 = vmatpush1.msra.mxu0 %v363
  %389 = vmatprep.subr.mxu0 0.0
  %390 = vmatpush1.msra.mxu0 %v364
  %391 = vmatprep.subr.mxu0 0.0
  %392 = vmatpush1.msra.mxu0 %v365
  %393 = vmatprep.subr.mxu0 0.0
  %394 = vmatpush1.msra.mxu0 %v366
  %395 = vmatprep.subr.mxu0 0.0
  %396 = vmatpush1.msra.mxu0 %v367
  %397 = vmatprep.subr.mxu0 0.0
  %398 = vmatpush1.msra.mxu0 %v368
  %399 = vmatprep.subr.mxu0 0.0
  %400 = vmatpush1.msra.mxu0 %v369
  %401 = vmatprep.subr.mxu0 0.0
  %402 = vmatpush1.msra.mxu0 %v370
  %403 = vmatprep.subr.mxu0 0.0
  %404 = vmatpush1.msra.mxu0 0.0
  %405 = vmatprep.subr.mxu0 0.0
  %406 = vmatpush1.msra.mxu0 0.0
  %407 = vmatprep.subr.mxu0 0.0
  %408 = vmatpush1.msra.mxu0 0.0
  %409 = vmatprep.subr.mxu0 0.0
  %410 = vmatpush1.msra.mxu0 0.0
  %411 = vmatprep.subr.mxu0 0.0
  %412 = vmatpush1.msra.mxu0 0.0
  %413 = vmatprep.subr.mxu0 0.0
  %414 = vmatpush1.msra.mxu0 0.0
  %415 = vmatprep.subr.mxu0 0.0
  %416 = vmatpush1.msra.mxu0 0.0
  %417 = vmatprep.subr.mxu0 0.0
  %418 = vmatpush1.msra.mxu0 0.0
  %419 = vmatprep.subr.mxu0 0.0
  %420 = vmatpush1.msra.mxu0 0.0
  %421 = vmatprep.subr.mxu0 0.0
  %422 = vmatpush1.msra.mxu0 0.0
  %423 = vmatprep.subr.mxu0 0.0
  %424 = vmatpush1.msra.mxu0 0.0
  %425 = vmatprep.subr.mxu0 0.0
  %426 = vmatpush1.msra.mxu0 0.0
  %427 = vmatprep.subr.mxu0 0.0
  %428 = vmatpush1.msra.mxu0 0.0
  %429 = vmatprep.subr.mxu0 0.0
  %430 = vmatpush1.msra.mxu0 0.0
  %431 = vmatprep.subr.mxu0 0.0
  %432 = vmatpush1.msra.mxu0 0.0
  %433 = vmatprep.subr.mxu0 0.0
  %434 = vmatpush1.msra.mxu0 0.0
  %435 = vmatprep.mubr.f32.mxu0 0.0
  %436 = vmatmul.mubr.f32.gmra.mrb[0].mxu0 %v354
  %v437 = vpop.f32.mrb[0].mxu0
  %v438 = vadd.f32 0.0, %v437
  %v439 = vpop.f32.mrb[0].mxu0
  %440 = vdwg.mxu0
  %vm441 = vcmask 261120
  %v442 = vsel %vm441, %v438, -inf
  %443 = vmax.xlane.f32.xlu0 %v442
  %v444 = vpop.xlane.xlu0 %443
  %v445 = vsub.f32 %v438, %v444
  %v446 = vmul.f32 %v445, 1.442695
  %v447 = vpow.pop %v446
  %v449 = vsel %vm441, %v447, 0
  %451 = vmatprep.subr.mxu0 0.0
  %452 = vmatpush1.msra.mxu0 %v48
  %453 = vmatprep.subr.mxu0 0.0
  %454 = vmatpush1.msra.mxu0 %v49
  %455 = vmatprep.subr.mxu0 0.0
  %456 = vmatpush1.msra.mxu0 %v50
  %457 = vmatprep.subr.mxu0 0.0
  %458 = vmatpush1.msra.mxu0 %v51
  %459 = vmatprep.subr.mxu0 0.0
  %460 = vmatpush1.msra.mxu0 0.0
  %461 = vmatprep.subr.mxu0 0.0
  %462 = vmatpush1.msra.mxu0 0.0
  %463 = vmatprep.subr.mxu0 0.0
  %464 = vmatpush1.msra.mxu0 0.0
  %465 = vmatprep.subr.mxu0 0.0
  %466 = vmatpush1.msra.mxu0 0.0
  %467 = vmatprep.subr.mxu0 0.0
  %468 = vmatpush1.msra.mxu0 0.0
  %469 = vmatprep.subr.mxu0 0.0
  %470 = vmatpush1.msra.mxu0 0.0
  %471 = vmatprep.subr.mxu0 0.0
  %472 = vmatpush1.msra.mxu0 0.0
  %473 = vmatprep.subr.mxu0 0.0
  %474 = vmatpush1.msra.mxu0 0.0
  %475 = vmatprep.subr.mxu0 0.0
  %476 = vmatpush1.msra.mxu0 0.0
  %477 = vmatprep.subr.mxu0 0.0
  %478 = vmatpush1.msra.mxu0 0.0
  %479 = vmatprep.subr.mxu0 0.0
  %480 = vmatpush1.msra.mxu0 0.0
  %481 = vmatprep.subr.mxu0 0.0
  %482 = vmatpush1.msra.mxu0 0.0
  %483 = vmatprep.subr.mxu0 0.0
  %484 = vmatpush1.msra.mxu0 0.0
  %485 = vmatprep.subr.mxu0 0.0
  %486 = vmatpush1.msra.mxu0 0.0
  %487 = vmatprep.subr.mxu0 0.0
  %488 = vmatpush1.msra.mxu0 0.0
  %489 = vmatprep.subr.mxu0 0.0
  %490 = vmatpush1.msra.mxu0 0.0
  %491 = vmatprep.subr.mxu0 0.0
  %492 = vmatpush1.msra.mxu0 0.0
  %493 = vmatprep.subr.mxu0 0.0
  %494 = vmatpush1.msra.mxu0 0.0
  %495 = vmatprep.subr.mxu0 0.0
  %496 = vmatpush1.msra.mxu0 0.0
  %497 = vmatprep.subr.mxu0 0.0
  %498 = vmatpush1.msra.mxu0 0.0
  %499 = vmatprep.subr.mxu0 0.0
  %500 = vmatpush1.msra.mxu0 0.0
  %501 = vmatprep.subr.mxu0 0.0
  %502 = vmatpush1.msra.mxu0 0.0
  %503 = vmatprep.subr.mxu0 0.0
  %504 = vmatpush1.msra.mxu0 0.0
  %505 = vmatprep.subr.mxu0 0.0
  %506 = vmatpush1.msra.mxu0 0.0
  %507 = vmatprep.subr.mxu0 0.0
  %508 = vmatpush1.msra.mxu0 0.0
  %509 = vmatprep.subr.mxu0 0.0
  %510 = vmatpush1.msra.mxu0 0.0
  %511 = vmatprep.subr.mxu0 0.0
  %512 = vmatpush1.msra.mxu0 0.0
  %513 = vmatprep.subr.mxu0 0.0
  %514 = vmatpush1.msra.mxu0 0.0
  %515 = vmatprep.mubr.f32.mxu0 0.0
  %516 = vmatmul.mubr.f32.gmra.mrb[0].mxu0 %v449
  %v517 = vpop.f32.mrb[0].mxu0
  %v518 = vadd.f32 0.0, %v517
  %v519 = vpop.f32.mrb[0].mxu0
  %520 = vdwg.mxu0
  %v521 = vrcp.pop %v518
  %v523 = vsel %vm201, %v521, 0
  %v526 = vsel %vm205, %v52, 0
  %528 = vmatprep.subr.mxu0 0.0
  %529 = vmatpush1.msra.mxu0 %v526
  %530 = vmatprep.subr.mxu0 0.0
  %531 = vmatpush1.msra.mxu0 0.0
  %532 = vmatprep.subr.mxu0 0.0
  %533 = vmatpush1.msra.mxu0 0.0
  %534 = vmatprep.subr.mxu0 0.0
  %535 = vmatpush1.msra.mxu0 0.0
  %536 = vmatprep.subr.mxu0 0.0
  %537 = vmatpush1.msra.mxu0 0.0
  %538 = vmatprep.subr.mxu0 0.0
  %539 = vmatpush1.msra.mxu0 0.0
  %540 = vmatprep.subr.mxu0 0.0
  %541 = vmatpush1.msra.mxu0 0.0
  %542 = vmatprep.subr.mxu0 0.0
  %543 = vmatpush1.msra.mxu0 0.0
  %544 = vmatprep.subr.mxu0 0.0
  %545 = vmatpush1.msra.mxu0 0.0
  %546 = vmatprep.subr.mxu0 0.0
  %547 = vmatpush1.msra.mxu0 0.0
  %548 = vmatprep.subr.mxu0 0.0
  %549 = vmatpush1.msra.mxu0 0.0
  %550 = vmatprep.subr.mxu0 0.0
  %551 = vmatpush1.msra.mxu0 0.0
  %552 = vmatprep.subr.mxu0 0.0
  %553 = vmatpush1.msra.mxu0 0.0
  %554 = vmatprep.subr.mxu0 0.0
  %555 = vmatpush1.msra.mxu0 0.0
  %556 = vmatprep.subr.mxu0 0.0
  %557 = vmatpush1.msra.mxu0 0.0
  %558 = vmatprep.subr.mxu0 0.0
  %559 = vmatpush1.msra.mxu0 0.0
  %560 = vmatprep.subr.mxu0 0.0
  %561 = vmatpush1.msra.mxu0 0.0
  %562 = vmatprep.subr.mxu0 0.0
  %563 = vmatpush1.msra.mxu0 0.0
  %564 = vmatprep.subr.mxu0 0.0
  %565 = vmatpush1.msra.mxu0 0.0
  %566 = vmatprep.subr.mxu0 0.0
  %567 = vmatpush1.msra.mxu0 0.0
  %568 = vmatprep.subr.mxu0 0.0
  %569 = vmatpush1.msra.mxu0 0.0
  %570 = vmatprep.subr.mxu0 0.0
  %571 = vmatpush1.msra.mxu0 0.0
  %572 = vmatprep.subr.mxu0 0.0
  %573 = vmatpush1.msra.mxu0 0.0
  %574 = vmatprep.subr.mxu0 0.0
  %575 = vmatpush1.msra.mxu0 0.0
  %576 = vmatprep.subr.mxu0 0.0
  %577 = vmatpush1.msra.mxu0 0.0
  %578 = vmatprep.subr.mxu0 0.0
  %579 = vmatpush1.msra.mxu0 0.0
  %580 = vmatprep.subr.mxu0 0.0
  %581 = vmatpush1.msra.mxu0 0.0
  %582 = vmatprep.subr.mxu0 0.0
  %583 = vmatpush1.msra.mxu0 0.0
  %584 = vmatprep.subr.mxu0 0.0
  %585 = vmatpush1.msra.mxu0 0.0
  %586 = vmatprep.subr.mxu0 0.0
  %587 = vmatpush1.msra.mxu0 0.0
  %588 = vmatprep.subr.mxu0 0.0
  %589 = vmatpush1.msra.mxu0 0.0
  %590 = vmatprep.subr.mxu0 0.0
  %591 = vmatpush1.msra.mxu0 0.0
  %592 = vmatprep.mubr.f32.mxu0 0.0
  %593 = vmatmul.mubr.f32.gmra.mrb[0].mxu0 %v523
  %v594 = vpop.f32.mrb[0].mxu0
  %v595 = vadd.f32 0.0, %v594
  %v596 = vpop.f32.mrb[0].mxu0
  %597 = vdwg.mxu0
  %v598 = vmul.f32 %v447, %v595
  %v599 = vld [vmem:[%s3] sm:$0xff]
  %v600 = vld [vmem:[%s3 + $0x8] sm:$0xff]
  %v601 = vld [vmem:[%s3 + $0x10] sm:$0xff]
  %v602 = vld [vmem:[%s3 + $0x18] sm:$0xff]
  %v604 = vsel %vm441, %v598, 0
  %606 = vmatprep.subr.mxu0 0.0
  %607 = vmatpush1.msra.mxu0 %v599
  %608 = vmatprep.subr.mxu0 0.0
  %609 = vmatpush1.msra.mxu0 %v600
  %610 = vmatprep.subr.mxu0 0.0
  %611 = vmatpush1.msra.mxu0 %v601
  %612 = vmatprep.subr.mxu0 0.0
  %613 = vmatpush1.msra.mxu0 %v602
  %614 = vmatprep.subr.mxu0 0.0
  %615 = vmatpush1.msra.mxu0 0.0
  %616 = vmatprep.subr.mxu0 0.0
  %617 = vmatpush1.msra.mxu0 0.0
  %618 = vmatprep.subr.mxu0 0.0
  %619 = vmatpush1.msra.mxu0 0.0
  %620 = vmatprep.subr.mxu0 0.0
  %621 = vmatpush1.msra.mxu0 0.0
  %622 = vmatprep.subr.mxu0 0.0
  %623 = vmatpush1.msra.mxu0 0.0
  %624 = vmatprep.subr.mxu0 0.0
  %625 = vmatpush1.msra.mxu0 0.0
  %626 = vmatprep.subr.mxu0 0.0
  %627 = vmatpush1.msra.mxu0 0.0
  %628 = vmatprep.subr.mxu0 0.0
  %629 = vmatpush1.msra.mxu0 0.0
  %630 = vmatprep.subr.mxu0 0.0
  %631 = vmatpush1.msra.mxu0 0.0
  %632 = vmatprep.subr.mxu0 0.0
  %633 = vmatpush1.msra.mxu0 0.0
  %634 = vmatprep.subr.mxu0 0.0
  %635 = vmatpush1.msra.mxu0 0.0
  %636 = vmatprep.subr.mxu0 0.0
  %637 = vmatpush1.msra.mxu0 0.0
  %638 = vmatprep.subr.mxu0 0.0
  %639 = vmatpush1.msra.mxu0 0.0
  %640 = vmatprep.subr.mxu0 0.0
  %641 = vmatpush1.msra.mxu0 0.0
  %642 = vmatprep.subr.mxu0 0.0
  %643 = vmatpush1.msra.mxu0 0.0
  %644 = vmatprep.subr.mxu0 0.0
  %645 = vmatpush1.msra.mxu0 0.0
  %646 = vmatprep.subr.mxu0 0.0
  %647 = vmatpush1.msra.mxu0 0.0
  %648 = vmatprep.subr.mxu0 0.0
  %649 = vmatpush1.msra.mxu0 0.0
  %650 = vmatprep.subr.mxu0 0.0
  %651 = vmatpush1.msra.mxu0 0.0
  %652 = vmatprep.subr.mxu0 0.0
  %653 = vmatpush1.msra.mxu0 0.0
  %654 = vmatprep.subr.mxu0 0.0
  %655 = vmatpush1.msra.mxu0 0.0
  %656 = vmatprep.subr.mxu0 0.0
  %657 = vmatpush1.msra.mxu0 0.0
  %658 = vmatprep.subr.mxu0 0.0
  %659 = vmatpush1.msra.mxu0 0.0
  %660 = vmatprep.subr.mxu0 0.0
  %661 = vmatpush1.msra.mxu0 0.0
  %662 = vmatprep.subr.mxu0 0.0
  %663 = vmatpush1.msra.mxu0 0.0
  %664 = vmatprep.subr.mxu0 0.0
  %665 = vmatpush1.msra.mxu0 0.0
  %666 = vmatprep.subr.mxu0 0.0
  %667 = vmatpush1.msra.mxu0 0.0
  %668 = vmatprep.subr.mxu0 0.0
  %669 = vmatpush1.msra.mxu0 0.0
  %670 = vmatprep.mubr.f32.mxu0 0.0
  %671 = vmatmul.mubr.f32.gmra.mrb[0].mxu0 %v604
  %v672 = vpop.f32.mrb[0].mxu0
  %v673 = vadd.f32 0.0, %v672
  %v674 = vpop.f32.mrb[0].mxu0
  %675 = vdwg.mxu0
  %v676 = vadd.f32 %v352, %v673
  %v677 = vsub.f32 %v676, %v353
  %v678 = vmul.f32 %v677, %v677
  %679 = vmatprep.subr.mxu0 0.0
  %680 = vmatpush1.msra.mxu0 %v31
  %681 = vmatprep.subr.mxu0 0.0
  %682 = vmatpush1.msra.mxu0 %v32
  %683 = vmatprep.subr.mxu0 0.0
  %684 = vmatpush1.msra.mxu0 %v33
  %685 = vmatprep.subr.mxu0 0.0
  %686 = vmatpush1.msra.mxu0 %v34
  %687 = vmatprep.subr.mxu0 0.0
  %688 = vmatpush1.msra.mxu0 %v35
  %689 = vmatprep.subr.mxu0 0.0
  %690 = vmatpush1.msra.mxu0 %v36
  %691 = vmatprep.subr.mxu0 0.0
  %692 = vmatpush1.msra.mxu0 %v37
  %693 = vmatprep.subr.mxu0 0.0
  %694 = vmatpush1.msra.mxu0 %v38
  %695 = vmatprep.subr.mxu0 0.0
  %696 = vmatpush1.msra.mxu0 %v39
  %697 = vmatprep.subr.mxu0 0.0
  %698 = vmatpush1.msra.mxu0 %v40
  %699 = vmatprep.subr.mxu0 0.0
  %700 = vmatpush1.msra.mxu0 %v41
  %701 = vmatprep.subr.mxu0 0.0
  %702 = vmatpush1.msra.mxu0 %v42
  %703 = vmatprep.subr.mxu0 0.0
  %704 = vmatpush1.msra.mxu0 %v43
  %705 = vmatprep.subr.mxu0 0.0
  %706 = vmatpush1.msra.mxu0 %v44
  %707 = vmatprep.subr.mxu0 0.0
  %708 = vmatpush1.msra.mxu0 %v45
  %709 = vmatprep.subr.mxu0 0.0
  %710 = vmatpush1.msra.mxu0 %v46
  %711 = vmatprep.subr.mxu0 0.0
  %712 = vmatpush1.msra.mxu0 0.0
  %713 = vmatprep.subr.mxu0 0.0
  %714 = vmatpush1.msra.mxu0 0.0
  %715 = vmatprep.subr.mxu0 0.0
  %716 = vmatpush1.msra.mxu0 0.0
  %717 = vmatprep.subr.mxu0 0.0
  %718 = vmatpush1.msra.mxu0 0.0
  %719 = vmatprep.subr.mxu0 0.0
  %720 = vmatpush1.msra.mxu0 0.0
  %721 = vmatprep.subr.mxu0 0.0
  %722 = vmatpush1.msra.mxu0 0.0
  %723 = vmatprep.subr.mxu0 0.0
  %724 = vmatpush1.msra.mxu0 0.0
  %725 = vmatprep.subr.mxu0 0.0
  %726 = vmatpush1.msra.mxu0 0.0
  %727 = vmatprep.subr.mxu0 0.0
  %728 = vmatpush1.msra.mxu0 0.0
  %729 = vmatprep.subr.mxu0 0.0
  %730 = vmatpush1.msra.mxu0 0.0
  %731 = vmatprep.subr.mxu0 0.0
  %732 = vmatpush1.msra.mxu0 0.0
  %733 = vmatprep.subr.mxu0 0.0
  %734 = vmatpush1.msra.mxu0 0.0
  %735 = vmatprep.subr.mxu0 0.0
  %736 = vmatpush1.msra.mxu0 0.0
  %737 = vmatprep.subr.mxu0 0.0
  %738 = vmatpush1.msra.mxu0 0.0
  %739 = vmatprep.subr.mxu0 0.0
  %740 = vmatpush1.msra.mxu0 0.0
  %741 = vmatprep.subr.mxu0 0.0
  %742 = vmatpush1.msra.mxu0 0.0
  %743 = vmatprep.mubr.f32.mxu0 0.0
  %744 = vmatmul.mubr.f32.gmra.mrb[0].mxu0 %v678
  %v745 = vpop.f32.mrb[0].mxu0
  %v746 = vadd.f32 0.001, %v745
  %v747 = vpop.f32.mrb[0].mxu0
  %748 = vdwg.mxu0
  %v749 = vrsqrt.pop %v746
  %v750 = vmul.f32 %v746, %v749
  %vm751 = vcmp.eq.f32.partialorder %v746, inf
  %v752 = vsel %vm751, %v746, %v750
  %vm753 = vcmp.eq.f32.partialorder %v746, 0.0
  %v754 = vand.u32 %v746, 2147483648
  %v755 = vsel %vm753, %v754, %v752
  %v756 = vsub.f32 0.0, %v755
  %757 = vst.msk [vmem:[%s8] sm:$0xff] %vm201, %v756
  // Predicated region
  $region34: #{tpu_custom_call.1} parent=0 // pred_check
    _
  $region35: #{tpu_custom_call.1} parent=0 // pred_check_branch
    %759 = sbr.rel (0) target = $region37
  $region36: #{tpu_custom_call.1} parent=0 // pred_region
    _
  $region37: #{tpu_custom_call.1} parent=0 // pred_fallthru
    _
  // Predicated region
  $region38: #{tpu_custom_call.1} parent=0 // pred_check
    _
  $region39: #{tpu_custom_call.1} parent=0 // pred_check_branch
    %761 = sbr.rel (0) target = $region41
  $region40: #{tpu_custom_call.1} parent=0 // pred_region
    _
  $region41: #{tpu_custom_call.1} parent=0 // pred_fallthru
    _

</llo_original>
